<compile_context>
chip_gen: v7x
topology: tpu7x:2x2x1
jax: 0.10.0
libtpu: 0.0.40
codegen_flags: <defaults>
</compile_context>

<pallas_src>
import functools

import jax
import jax.numpy as jnp
from jax.experimental import pallas as pl
from jax.experimental.pallas import tpu as pltpu


def _modulated_sine_kernel(x_ref, w1_ref, b1_ref, w2_ref, b2_ref, o_ref, *,
                           isize, latent_channels, out_channels, is_first):
    x = x_ref[...].astype(jnp.float32)

    # Channel decomposition is a static in-VMEM view (no extra HBM traffic).
    sine_in = x[:, :isize]
    mod_in = x[:, isize:]
    if is_first:
        latent_feats = mod_in
    else:
        latent_feats = x[:, x.shape[1] - latent_channels:]

    w1 = w1_ref[...].astype(jnp.float32)
    w2 = w2_ref[...].astype(jnp.float32)
    b1 = b1_ref[...].astype(jnp.float32)   # (1, O)
    b2 = b2_ref[...].astype(jnp.float32)   # (1, O)

    # Two biased matmuls on the MXU (f32 accumulation).
    pre1 = jnp.dot(sine_in, w1, preferred_element_type=jnp.float32) + b1
    pre2 = jnp.dot(mod_in, w2, preferred_element_type=jnp.float32) + b2

    modulation = jnp.maximum(pre2, 0.0)       # ReLU (VPU)
    modulated = modulation * jnp.sin(pre1)    # sin -> EUP, FiLM multiply -> VPU

    # Concatenation == three static-offset stores into the output tile.
    o = out_channels
    o_ref[:, :o] = modulated.astype(o_ref.dtype)
    o_ref[:, o:2 * o] = modulation.astype(o_ref.dtype)
    o_ref[:, 2 * o:] = latent_feats.astype(o_ref.dtype)


def modulated_sine(x, w1, b1, w2, b2, *, latent_channels, is_first,
                   batch_block=None):
    """Fused Pallas forward for one ModulatedSine layer.

    x  : (B, C_in) with C_in = isize + mod_c
    w1 : (isize, O), b1 : (O,)   -> lin1   (stored as (in, out))
    w2 : (mod_c, O), b2 : (O,)   -> lin2
    returns (B, 2*O + latent_channels)
    """
    B, c_in = x.shape
    isize, out_channels = w1.shape
    mod_c = w2.shape[0]
    assert c_in == isize + mod_c, (c_in, isize, mod_c)
    c_out = 2 * out_channels + latent_channels

    # Batch tiling: gives pipelining + lets the grid shard across TCs on v7x.
    if batch_block is None:
        batch_block = min(B, 128)
    if B % batch_block != 0:
        batch_block = B          # fall back to a single full block
    grid = (B // batch_block,)

    b1_2d = b1.reshape(1, out_channels)
    b2_2d = b2.reshape(1, out_channels)

    kernel = functools.partial(
        _modulated_sine_kernel,
        isize=isize,
        latent_channels=latent_channels,
        out_channels=out_channels,
        is_first=is_first,
    )

    return pl.pallas_call(
        kernel,
        out_shape=jax.ShapeDtypeStruct((B, c_out), x.dtype),
        grid=grid,
        in_specs=[
            pl.BlockSpec((batch_block, c_in), lambda i: (i, 0)),
            # Weights/biases: constant index_map -> stay VMEM-resident
            # across grid steps (no re-DMA).
            pl.BlockSpec((isize, out_channels), lambda i: (0, 0)),
            pl.BlockSpec((1, out_channels), lambda i: (0, 0)),
            pl.BlockSpec((mod_c, out_channels), lambda i: (0, 0)),
            pl.BlockSpec((1, out_channels), lambda i: (0, 0)),
        ],
        out_specs=pl.BlockSpec((batch_block, c_out), lambda i: (i, 0)),
        compiler_params=pltpu.CompilerParams(
            dimension_semantics=("parallel",)),
    )(x, w1, b1_2d, w2, b2_2d)


def _ref_forward(x, w1, b1, w2, b2, *, latent_channels, is_first):
    """Pure-JAX mirror of the PyTorch ModulatedSine.forward (ground truth)."""
    isize = w1.shape[0]
    sine_input = x[:, :isize]
    modulation_input = x[:, isize:]
    if is_first:
        latent_features = modulation_input
    else:
        latent_features = x[:, x.shape[1] - latent_channels:]
    modulation = jax.nn.relu(modulation_input @ w2 + b2)
    modulated = modulation * jnp.sin(sine_input @ w1 + b1)
    return jnp.concatenate([modulated, modulation, latent_features], axis=1)


if __name__ == "__main__":
    key = jax.random.PRNGKey(0)
    ks = jax.random.split(key, 10)

    B = 16
    latent_c = 16
    out_c = 32

    # ---- Layer 0: is_first=True, input_channels=48 -> isize = 32 ----
    in_c0 = 48
    isize0 = in_c0 - latent_c
    x0 = jax.random.normal(ks[0], (B, in_c0), dtype=jnp.float32)
    w1_0 = 0.1 * jax.random.normal(ks[1], (isize0, out_c), dtype=jnp.float32)
    b1_0 = 0.1 * jax.random.normal(ks[2], (out_c,), dtype=jnp.float32)
    w2_0 = 0.1 * jax.random.normal(ks[3], (latent_c, out_c), dtype=jnp.float32)
    b2_0 = 0.1 * jax.random.normal(ks[4], (out_c,), dtype=jnp.float32)

    y0 = modulated_sine(x0, w1_0, b1_0, w2_0, b2_0,
                        latent_channels=latent_c, is_first=True,
                        batch_block=8)
    y0 = jax.block_until_ready(y0)
    ref0 = _ref_forward(x0, w1_0, b1_0, w2_0, b2_0,
                        latent_channels=latent_c, is_first=True)
    assert y0.shape == (B, 2 * out_c + latent_c)
    assert jnp.allclose(y0, ref0, atol=1e-3, rtol=1e-3)

    # ---- Layer 1: is_first=False, input_channels=32 (= prev layer output) ----
    in_c1 = out_c
    isize1 = in_c1
    mod_c1 = in_c1 + latent_c
    x1 = y0                      # (B, 2*out_c + latent_c) == (B, isize1 + mod_c1)
    w1_1 = 0.1 * jax.random.normal(ks[5], (isize1, out_c), dtype=jnp.float32)
    b1_1 = 0.1 * jax.random.normal(ks[6], (out_c,), dtype=jnp.float32)
    w2_1 = 0.1 * jax.random.normal(ks[7], (mod_c1, out_c), dtype=jnp.float32)
    b2_1 = 0.1 * jax.random.normal(ks[8], (out_c,), dtype=jnp.float32)

    y1 = modulated_sine(x1, w1_1, b1_1, w2_1, b2_1,
                        latent_channels=latent_c, is_first=False,
                        batch_block=8)
    y1 = jax.block_until_ready(y1)
    ref1 = _ref_forward(x1, w1_1, b1_1, w2_1, b2_1,
                        latent_channels=latent_c, is_first=False)
    assert y1.shape == (B, 2 * out_c + latent_c)
    assert jnp.allclose(y1, ref1, atol=1e-3, rtol=1e-3)

    print("KERNEL_OK")
</pallas_src>

<mosaic_0001>
module attributes {stable_mosaic.version = 11 : i64} {
  func.func @_modulated_sine_kernel(%arg0: i32, %arg1: memref<8x48xf32, #tpu.memory_space<vmem>>, %arg2: memref<32x32xf32, #tpu.memory_space<vmem>>, %arg3: memref<1x32xf32, #tpu.memory_space<vmem>>, %arg4: memref<16x32xf32, #tpu.memory_space<vmem>>, %arg5: memref<1x32xf32, #tpu.memory_space<vmem>>, %arg6: memref<8x80xf32, #tpu.memory_space<vmem>>) attributes {dimension_semantics = [#tpu.dimension_semantics<parallel>], iteration_bounds = array<i64: 2>, scalar_prefetch = 0 : i64, scratch_operands = 0 : i64, tpu.core_type = #tpu.core_type<tc>, window_params = [{transform_indices = @transform_0, window_bounds = array<i64: 8, 48>}, {pipeline_mode = #tpu.pipeline_mode<synchronous>, transform_indices = @transform_1, window_bounds = array<i64: 32, 32>}, {pipeline_mode = #tpu.pipeline_mode<synchronous>, transform_indices = @transform_2, window_bounds = array<i64: 1, 32>}, {pipeline_mode = #tpu.pipeline_mode<synchronous>, transform_indices = @transform_3, window_bounds = array<i64: 16, 32>}, {pipeline_mode = #tpu.pipeline_mode<synchronous>, transform_indices = @transform_4, window_bounds = array<i64: 1, 32>}, {transform_indices = @transform_5, window_bounds = array<i64: 8, 80>}]} {
    %c0 = arith.constant 0 : index
    %c0_0 = arith.constant 0 : index
    %0 = vector.load %arg1[%c0, %c0_0] : memref<8x48xf32, #tpu.memory_space<vmem>>, vector<8x48xf32>
    %1 = vector.extract_strided_slice %0 {offsets = [0, 0], sizes = [8, 32], strides = [1, 1]} : vector<8x48xf32> to vector<8x32xf32>
    %2 = vector.extract_strided_slice %0 {offsets = [0, 32], sizes = [8, 16], strides = [1, 1]} : vector<8x48xf32> to vector<8x16xf32>
    %c0_1 = arith.constant 0 : index
    %c0_2 = arith.constant 0 : index
    %3 = vector.load %arg2[%c0_1, %c0_2] : memref<32x32xf32, #tpu.memory_space<vmem>>, vector<32x32xf32>
    %c0_3 = arith.constant 0 : index
    %c0_4 = arith.constant 0 : index
    %4 = vector.load %arg4[%c0_3, %c0_4] : memref<16x32xf32, #tpu.memory_space<vmem>>, vector<16x32xf32>
    %c0_5 = arith.constant 0 : index
    %c0_6 = arith.constant 0 : index
    %5 = vector.load %arg3[%c0_5, %c0_6] : memref<1x32xf32, #tpu.memory_space<vmem>>, vector<1x32xf32>
    %c0_7 = arith.constant 0 : index
    %c0_8 = arith.constant 0 : index
    %6 = vector.load %arg5[%c0_7, %c0_8] : memref<1x32xf32, #tpu.memory_space<vmem>>, vector<1x32xf32>
    %cst = arith.constant dense<0.000000e+00> : vector<8x32xf32>
    %7 = tpu.matmul %1, %3, %cst {dimension_numbers = #tpu.dot_dimension_numbers<[1], [0], [0], [1], [0, 0, 1, 1], [], []>} : vector<8x32xf32>, vector<32x32xf32>, vector<8x32xf32> -> vector<8x32xf32>
    %8 = vector.broadcast %5 : vector<1x32xf32> to vector<8x32xf32>
    %9 = arith.addf %7, %8 : vector<8x32xf32>
    %cst_9 = arith.constant dense<0.000000e+00> : vector<8x32xf32>
    %10 = tpu.matmul %2, %4, %cst_9 {dimension_numbers = #tpu.dot_dimension_numbers<[1], [0], [0], [1], [0, 0, 1, 1], [], []>} : vector<8x16xf32>, vector<16x32xf32>, vector<8x32xf32> -> vector<8x32xf32>
    %11 = vector.broadcast %6 : vector<1x32xf32> to vector<8x32xf32>
    %12 = arith.addf %10, %11 : vector<8x32xf32>
    %cst_10 = arith.constant 0.000000e+00 : f32
    %13 = vector.broadcast %cst_10 : f32 to vector<8x32xf32>
    %14 = arith.maximumf %12, %13 : vector<8x32xf32>
    %15 = math.sin %9 : vector<8x32xf32>
    %16 = arith.mulf %14, %15 : vector<8x32xf32>
    %c0_11 = arith.constant 0 : index
    %c0_12 = arith.constant 0 : index
    %17 = vector.load %arg6[%c0_11, %c0_12] : memref<8x80xf32, #tpu.memory_space<vmem>>, vector<8x32xf32>
    tpu.vector_store %arg6[%c0_11, %c0_12], %16 {strides = array<i32>} : memref<8x80xf32, #tpu.memory_space<vmem>>, vector<8x32xf32>,
    %c0_13 = arith.constant 0 : index
    %c32 = arith.constant 32 : index
    %18 = vector.load %arg6[%c0_13, %c32] : memref<8x80xf32, #tpu.memory_space<vmem>>, vector<8x32xf32>
    tpu.vector_store %arg6[%c0_13, %c32], %14 {strides = array<i32>} : memref<8x80xf32, #tpu.memory_space<vmem>>, vector<8x32xf32>,
    %c0_14 = arith.constant 0 : index
    %c64 = arith.constant 64 : index
    %19 = vector.load %arg6[%c0_14, %c64] : memref<8x80xf32, #tpu.memory_space<vmem>>, vector<8x16xf32>
    tpu.vector_store %arg6[%c0_14, %c64], %2 {strides = array<i32>} : memref<8x80xf32, #tpu.memory_space<vmem>>, vector<8x16xf32>,
    return
  }
  func.func @transform_0(%arg0: i32) -> (i32, i32) {
    %c0_i32 = arith.constant 0 : i32
    %c0_i32_0 = arith.constant 0 : i32
    return %arg0, %c0_i32 : i32, i32
  }
  func.func @transform_1(%arg0: i32) -> (i32, i32) {
    %c0_i32 = arith.constant 0 : i32
    %c0_i32_0 = arith.constant 0 : i32
    %c0_i32_1 = arith.constant 0 : i32
    return %c0_i32, %c0_i32_0 : i32, i32
  }
  func.func @transform_2(%arg0: i32) -> (i32, i32) {
    %c0_i32 = arith.constant 0 : i32
    %c0_i32_0 = arith.constant 0 : i32
    %c0_i32_1 = arith.constant 0 : i32
    return %c0_i32, %c0_i32_0 : i32, i32
  }
  func.func @transform_3(%arg0: i32) -> (i32, i32) {
    %c0_i32 = arith.constant 0 : i32
    %c0_i32_0 = arith.constant 0 : i32
    %c0_i32_1 = arith.constant 0 : i32
    return %c0_i32, %c0_i32_0 : i32, i32
  }
  func.func @transform_4(%arg0: i32) -> (i32, i32) {
    %c0_i32 = arith.constant 0 : i32
    %c0_i32_0 = arith.constant 0 : i32
    %c0_i32_1 = arith.constant 0 : i32
    return %c0_i32, %c0_i32_0 : i32, i32
  }
  func.func @transform_5(%arg0: i32) -> (i32, i32) {
    %c0_i32 = arith.constant 0 : i32
    %c0_i32_0 = arith.constant 0 : i32
    return %arg0, %c0_i32 : i32, i32
  }
}

</mosaic_0001>

<llo_original>
// kernel: tpu_custom_call.1
$region0: #{tpu_custom_call.1}
  #allocation0 [shape = 'u32[]', space=smem, size = 0x4, offset = 0x4, fixed_abs, tag = 'smem constant byte address 0x4 - core index']
  #allocation1 [shape = 'u32[144,128]{1,0:T(1,128)}', space=vmem, size = 0x12000, scoped, tag = 'internal scratch']
  %s0 = inlined_call_operand.hbm [shape: f32[16,48], index: 0, kind: input, shape index: {}]
  %s1 = inlined_call_operand.hbm [shape: f32[32,32], index: 1, kind: input, shape index: {}]
  %s2 = inlined_call_operand.vmem [shape: f32[1,32], index: 2, kind: input, shape index: {}]
  %s3 = inlined_call_operand.hbm [shape: f32[16,32], index: 3, kind: input, shape index: {}]
  %s4 = inlined_call_operand.vmem [shape: f32[1,32], index: 4, kind: input, shape index: {}]
  %s5 = inlined_call_operand.hbm [shape: f32[16,80], index: 5, kind: output, shape index: {}]
  %s6 = sld [smem:[#allocation0]]
  $region65: #{tpu_custom_call.1} parent=0
    _
  %s8 = ssub.s32 1, %s6
  %s9 = scalar_select 0, %s8, %s6
  $region1: #{tpu_custom_call.1} parent=0
    #allocation2 [shape = 'u8[8192]{0}', space=vmem, size = 0x2000, scoped, tag = 'input window, operand 0']
    #allocation3 [shape = 's32[2]{0}', space=sflag, size = 0x8, scoped, tag = 'scoped memory for tpu_custom_call.1']
    #allocation4 [shape = 's32[2]{0}', space=sflag, size = 0x8, scoped, tag = 'scoped memory for tpu_custom_call.1']
    #allocation5 [shape = 'u8[16384]{0}', space=vmem, size = 0x4000, scoped, tag = 'input window, operand 1, single buffered']
    #allocation6 [shape = 's32[1]{0}', space=sflag, size = 0x4, scoped, tag = 'scoped memory for tpu_custom_call.1']
    #allocation7 [shape = 'u8[8192]{0}', space=vmem, size = 0x2000, scoped, tag = 'input window, operand 3, single buffered']
    #allocation8 [shape = 'u8[8192]{0}', space=vmem, size = 0x2000, scoped, tag = 'output window, operand 0']
    %10 = vsyncpa [#allocation3], 0
    %s11 = scalar_lea.sflag [#allocation3], 1
    %12 = vsyncpa %s11, 0
    %13 = vsyncpa [#allocation6], 0
    %14 = vsyncpa [#allocation4], 0
    %s15 = scalar_lea.sflag [#allocation4], 1
    %16 = vsyncpa %s15, 0
    loop: start=0, step=1, limit=4
    $region2: #{tpu_custom_call.1} parent=1 // loop_pre_header
      _
    $region3: #{tpu_custom_call.1} parent=1 // loop_header
      %s18 = sphi 0, %s22
      %p19 = scmp.ge.s32.totalorder %s18, 4
      %s28 = sphi 0, %s30
      %s31 = sphi 0, %s28
      %s32 = sphi 0, %s31
      %s48 = sphi 0, %s32
      %s52 = sphi 0, %s52
      %s54 = sphi 0, %s52
      %s55 = sphi 0, %s54
      %s69 = sphi 0, %s55
      %s73 = sphi 0, %s73
      %s75 = sphi 0, %s73
      %s76 = sphi 0, %s75
      %s90 = sphi 0, %s76
      %s94 = sphi 0, %s94
      %s96 = sphi 0, %s94
      %s97 = sphi 0, %s96
      %s111 = sphi 0, %s97
      %s115 = sphi 0, %s115
      %s117 = sphi 0, %s115
      %s118 = sphi 0, %s117
      %s132 = sphi 0, %s118
      %s138 = sphi 0, %s140
      %s141 = sphi 0, %s138
      %s142 = sphi 0, %s141
      %s158 = sphi 0, %s142
    $region4: #{tpu_custom_call.1} parent=1 // loop_header_branch
      %21 = sbr.rel (%p19) target = $region8
    $region5: #{tpu_custom_call.1} parent=1 // loop_body
      %s23 = ssub.s32 %s18, 1
      %s24 = ssub.s32 %s18, 2
      %s25 = sadd.s32 %s18, 1
      %s26 = ssub.s32 %s18, %s25
      %p27 = scmp.eq.s32.totalorder %s26, 0
      %s29 = sadd.s32 %s28, 1
      %s30 = scalar_select %p27, %s28, %s29
      %p33 = pneg %p27
      %p34 = scmp.eq.s32.totalorder %s18, 1
      %p35 = por %p33, %p34
      %p36 = scmp.ne.s32.totalorder %s28, %s31
      %p37 = scmp.eq.s32.totalorder %s18, 0
      %p38 = por %p36, %p37
      %p39 = scmp.ne.s32.totalorder %s28, %s31
      %p40 = scmp.eq.s32.totalorder %s23, 1
      %p41 = por %p39, %p40
      %p42 = scmp.ne.s32.totalorder %s31, %s32
      %p43 = scmp.eq.s32.totalorder %s23, 0
      %p44 = por %p42, %p43
      %p45 = scmp.ne.s32.totalorder %s31, %s32
      %p46 = scmp.eq.s32.totalorder %s24, 1
      %p47 = por %p45, %p46
      %p49 = scmp.ne.s32.totalorder %s32, %s48
      %p50 = scmp.eq.s32.totalorder %s24, 0
      %p51 = por %p49, %p50
      %s53 = sadd.s32 %s52, 1
      %p56 = scmp.eq.s32.totalorder %s18, 1
      %p57 = scmp.ne.s32.totalorder %s52, %s54
      %p58 = scmp.eq.s32.totalorder %s18, 0
      %p59 = por %p57, %p58
      %p60 = scmp.ne.s32.totalorder %s52, %s54
      %p61 = scmp.eq.s32.totalorder %s23, 1
      %p62 = por %p60, %p61
      %p63 = scmp.ne.s32.totalorder %s54, %s55
      %p64 = scmp.eq.s32.totalorder %s23, 0
      %p65 = por %p63, %p64
      %p66 = scmp.ne.s32.totalorder %s54, %s55
      %p67 = scmp.eq.s32.totalorder %s24, 1
      %p68 = por %p66, %p67
      %p70 = scmp.ne.s32.totalorder %s55, %s69
      %p71 = scmp.eq.s32.totalorder %s24, 0
      %p72 = por %p70, %p71
      %s74 = sadd.s32 %s73, 1
      %p77 = scmp.eq.s32.totalorder %s18, 1
      %p78 = scmp.ne.s32.totalorder %s73, %s75
      %p79 = scmp.eq.s32.totalorder %s18, 0
      %p80 = por %p78, %p79
      %p81 = scmp.ne.s32.totalorder %s73, %s75
      %p82 = scmp.eq.s32.totalorder %s23, 1
      %p83 = por %p81, %p82
      %p84 = scmp.ne.s32.totalorder %s75, %s76
      %p85 = scmp.eq.s32.totalorder %s23, 0
      %p86 = por %p84, %p85
      %p87 = scmp.ne.s32.totalorder %s75, %s76
      %p88 = scmp.eq.s32.totalorder %s24, 1
      %p89 = por %p87, %p88
      %p91 = scmp.ne.s32.totalorder %s76, %s90
      %p92 = scmp.eq.s32.totalorder %s24, 0
      %p93 = por %p91, %p92
      %s95 = sadd.s32 %s94, 1
      %p98 = scmp.eq.s32.totalorder %s18, 1
      %p99 = scmp.ne.s32.totalorder %s94, %s96
      %p100 = scmp.eq.s32.totalorder %s18, 0
      %p101 = por %p99, %p100
      %p102 = scmp.ne.s32.totalorder %s94, %s96
      %p103 = scmp.eq.s32.totalorder %s23, 1
      %p104 = por %p102, %p103
      %p105 = scmp.ne.s32.totalorder %s96, %s97
      %p106 = scmp.eq.s32.totalorder %s23, 0
      %p107 = por %p105, %p106
      %p108 = scmp.ne.s32.totalorder %s96, %s97
      %p109 = scmp.eq.s32.totalorder %s24, 1
      %p110 = por %p108, %p109
      %p112 = scmp.ne.s32.totalorder %s97, %s111
      %p113 = scmp.eq.s32.totalorder %s24, 0
      %p114 = por %p112, %p113
      %s116 = sadd.s32 %s115, 1
      %p119 = scmp.eq.s32.totalorder %s18, 1
      %p120 = scmp.ne.s32.totalorder %s115, %s117
      %p121 = scmp.eq.s32.totalorder %s18, 0
      %p122 = por %p120, %p121
      %p123 = scmp.ne.s32.totalorder %s115, %s117
      %p124 = scmp.eq.s32.totalorder %s23, 1
      %p125 = por %p123, %p124
      %p126 = scmp.ne.s32.totalorder %s117, %s118
      %p127 = scmp.eq.s32.totalorder %s23, 0
      %p128 = por %p126, %p127
      %p129 = scmp.ne.s32.totalorder %s117, %s118
      %p130 = scmp.eq.s32.totalorder %s24, 1
      %p131 = por %p129, %p130
      %p133 = scmp.ne.s32.totalorder %s118, %s132
      %p134 = scmp.eq.s32.totalorder %s24, 0
      %p135 = por %p133, %p134
      %s136 = ssub.s32 %s18, %s25
      %p137 = scmp.eq.s32.totalorder %s136, 0
      %s139 = sadd.s32 %s138, 1
      %s140 = scalar_select %p137, %s138, %s139
      %p143 = pneg %p137
      %p144 = scmp.eq.s32.totalorder %s18, 1
      %p145 = por %p143, %p144
      %p146 = scmp.ne.s32.totalorder %s138, %s141
      %p147 = scmp.eq.s32.totalorder %s18, 0
      %p148 = por %p146, %p147
      %p149 = scmp.ne.s32.totalorder %s138, %s141
      %p150 = scmp.eq.s32.totalorder %s23, 1
      %p151 = por %p149, %p150
      %p152 = scmp.ne.s32.totalorder %s141, %s142
      %p153 = scmp.eq.s32.totalorder %s23, 0
      %p154 = por %p152, %p153
      %p155 = scmp.ne.s32.totalorder %s141, %s142
      %p156 = scmp.eq.s32.totalorder %s24, 1
      %p157 = por %p155, %p156
      %p159 = scmp.ne.s32.totalorder %s142, %s158
      %p160 = scmp.eq.s32.totalorder %s24, 0
      %p161 = por %p159, %p160
      %p162 = scmp.le.s32.totalorder 1, %s18
      %p163 = scmp.lt.s32.totalorder %s18, 3
      %p164 = pnand %p162, %p163
      %p165 = pneg %p164
      // Predicated region
      $region9: #{tpu_custom_call.1} parent=5 // pred_check
        _
      $region10: #{tpu_custom_call.1} parent=5 // pred_check_branch
        %167 = sbr.rel (%p164) target = $region12
      $region11: #{tpu_custom_call.1} parent=5 // pred_region
        %s168 = ssub.s32 %s18, 1
        // Predicated region
        $region13: #{tpu_custom_call.1} parent=11 // pred_check
          %p169 = pneg %p65
        $region14: #{tpu_custom_call.1} parent=11 // pred_check_branch
          %171 = sbr.rel (%p169) target = $region16
        $region15: #{tpu_custom_call.1} parent=11 // pred_region
          %s173 = ssub.s32 512, 512
          %174 = vsyncadd [#allocation6], %s173
          %s175 = sshll.u32 [#allocation5], 4
          %s176 = int_to_ptr.vmem [resolvable:$true] %s175
          %181 = dma.hbm_to_vmem [thread:$0]  %s1, 512, %s176, [#allocation6], 128, 128, 8
        $region16: #{tpu_custom_call.1} parent=11 // pred_fallthru
          _
        // Predicated region
        $region17: #{tpu_custom_call.1} parent=11 // pred_check
          %p182 = pneg %p86
        $region18: #{tpu_custom_call.1} parent=11 // pred_check_branch
          %184 = sbr.rel (%p182) target = $region20
        $region19: #{tpu_custom_call.1} parent=11 // pred_region
          _
        $region20: #{tpu_custom_call.1} parent=11 // pred_fallthru
          _
        // Predicated region
        $region21: #{tpu_custom_call.1} parent=11 // pred_check
          %p185 = pneg %p107
        $region22: #{tpu_custom_call.1} parent=11 // pred_check_branch
          %187 = sbr.rel (%p185) target = $region24
        $region23: #{tpu_custom_call.1} parent=11 // pred_region
          %s189 = ssub.s32 256, 256
          %190 = vsyncadd [#allocation6], %s189
          %s191 = sshll.u32 [#allocation7], 4
          %s192 = int_to_ptr.vmem [resolvable:$true] %s191
          %197 = dma.hbm_to_vmem [thread:$0]  %s3, 256, %s192, [#allocation6], 128, 128, 8
        $region24: #{tpu_custom_call.1} parent=11 // pred_fallthru
          _
        // Predicated region
        $region25: #{tpu_custom_call.1} parent=11 // pred_check
          %p198 = pneg %p128
        $region26: #{tpu_custom_call.1} parent=11 // pred_check_branch
          %200 = sbr.rel (%p198) target = $region28
        $region27: #{tpu_custom_call.1} parent=11 // pred_region
          _
        $region28: #{tpu_custom_call.1} parent=11 // pred_fallthru
          _
      $region12: #{tpu_custom_call.1} parent=5 // pred_fallthru
        _
      %p201 = scmp.lt.s32.totalorder %s18, 2
      // Predicated region
      $region29: #{tpu_custom_call.1} parent=5 // pred_check
        %p202 = pneg %p201
      $region30: #{tpu_custom_call.1} parent=5 // pred_check_branch
        %204 = sbr.rel (%p202) target = $region32
      $region31: #{tpu_custom_call.1} parent=5 // pred_region
        // Predicated region
        $region33: #{tpu_custom_call.1} parent=31 // pred_check
          %p205 = pneg %p38
        $region34: #{tpu_custom_call.1} parent=31 // pred_check_branch
          %207 = sbr.rel (%p205) target = $region36
        $region35: #{tpu_custom_call.1} parent=31 // pred_region
          %s208 = sand.u32 %s28, 1
          %s209 = scalar_lea.sflag [#allocation3], %s208
          %s210 = sand.u32 %s28, 1
          %s211 = smul.addr %s210, 8
          %s212 = scalar_lea.vmem [#allocation2], %s211
          %s214 = ssub.s32 128, 128
          %215 = vsyncadd %s209, %s214
          %s216 = smul.addr %s18, 128
          %s217 = scalar_lea.hbm %s0, %s216
          %s219 = sshll.u32 %s212, 4
          %s220 = int_to_ptr.vmem [resolvable:$true] %s219
          %222 = dma.hbm_to_vmem [thread:$0]  %s217, 128, %s220, %s209
        $region36: #{tpu_custom_call.1} parent=31 // pred_fallthru
          _
      $region32: #{tpu_custom_call.1} parent=5 // pred_fallthru
        _
      %p223 = scmp.le.s32.totalorder 1, %s18
      %p224 = scmp.lt.s32.totalorder %s18, 3
      %p225 = pnand %p223, %p224
      %p226 = pneg %p225
      // Predicated region
      $region37: #{tpu_custom_call.1} parent=5 // pred_check
        _
      $region38: #{tpu_custom_call.1} parent=5 // pred_check_branch
        %228 = sbr.rel (%p225) target = $region40
      $region39: #{tpu_custom_call.1} parent=5 // pred_region
        %s229 = ssub.s32 %s18, 1
        %s230 = sand.u32 %s31, 1
        %s231 = scalar_lea.sflag [#allocation3], %s230
        %s232 = sand.u32 %s31, 1
        %s233 = smul.addr %s232, 8
        %s234 = scalar_lea.vmem [#allocation2], %s233
        // Predicated region
        $region41: #{tpu_custom_call.1} parent=39 // pred_check
          %p235 = pneg %p44
        $region42: #{tpu_custom_call.1} parent=39 // pred_check_branch
          %237 = sbr.rel (%p235) target = $region44
        $region43: #{tpu_custom_call.1} parent=39 // pred_region
          %238 = dma.done %s231, 128
        $region44: #{tpu_custom_call.1} parent=39 // pred_fallthru
          _
        // Predicated region
        $region45: #{tpu_custom_call.1} parent=39 // pred_check
          %p239 = pneg %p65
        $region46: #{tpu_custom_call.1} parent=39 // pred_check_branch
          %241 = sbr.rel (%p239) target = $region48
        $region47: #{tpu_custom_call.1} parent=39 // pred_region
          %242 = dma.done [#allocation6], 512
        $region48: #{tpu_custom_call.1} parent=39 // pred_fallthru
          _
        // Predicated region
        $region49: #{tpu_custom_call.1} parent=39 // pred_check
          %p243 = pneg %p107
        $region50: #{tpu_custom_call.1} parent=39 // pred_check_branch
          %245 = sbr.rel (%p243) target = $region52
        $region51: #{tpu_custom_call.1} parent=39 // pred_region
          %246 = dma.done [#allocation6], 256
        $region52: #{tpu_custom_call.1} parent=39 // pred_fallthru
          _
        %s247 = sand.u32 %s31, 1
        %s248 = scalar_lea.sflag [#allocation3], %s247
        %s249 = sand.u32 %s31, 1
        %s250 = smul.addr %s249, 8
        %s251 = scalar_lea.vmem [#allocation2], %s250
        %p252 = pneg %p44
        %p253 = pneg %p41
        %p254 = pneg %p65
        %p255 = pneg %p62
        %p256 = pneg %p86
        %p257 = pneg %p83
        %p258 = pneg %p107
        %p259 = pneg %p104
        %p260 = pneg %p128
        %p261 = pneg %p125
        %p262 = pneg %p154
        %p263 = pneg %p151
        %s264 = sand.u32 %s141, 1
        %s265 = scalar_lea.sflag [#allocation4], %s264
        %s266 = sand.u32 %s141, 1
        %s267 = smul.addr %s266, 8
        %s268 = scalar_lea.vmem [#allocation8], %s267
        %v269 = vld [vmem:[%s234] sm:$0xff]
        %v270 = vld [vmem:[#allocation5] sm:$0xff]
        %v271 = vld [vmem:[#allocation5 + $0x8] sm:$0xff]
        %v272 = vld [vmem:[#allocation5 + $0x10] sm:$0xff]
        %v273 = vld [vmem:[#allocation5 + $0x18] sm:$0xff]
        %v274 = vld [vmem:[#allocation7] sm:$0xff]
        %v275 = vld [vmem:[#allocation7 + $0x8] sm:$0xff]
        %v276 = vld [vmem:[%s2] sm:$0x1]
        %v277 = vld [vmem:[%s4] sm:$0x1]
        %v279 = vlaneseq
        %v280 = vshrl.u32 %v279, 7
        %v281 = vsub.s32 0, %v280
        %v282 = vrot.slane %v276, %v281
        %vm284 = vcmask 261120
        %v286 = vsel %vm284, %v269, 0
        %288 = vmatprep.subr.mxu0 0.0
        %289 = vmatpush1.msra.mxu0 %v270
        %290 = vmatprep.subr.mxu0 0.0
        %291 = vmatpush1.msra.mxu0 %v271
        %292 = vmatprep.subr.mxu0 0.0
        %293 = vmatpush1.msra.mxu0 %v272
        %294 = vmatprep.subr.mxu0 0.0
        %295 = vmatpush1.msra.mxu0 %v273
        %296 = vmatprep.subr.mxu0 0.0
        %297 = vmatpush1.msra.mxu0 0.0
        %298 = vmatprep.subr.mxu0 0.0
        %299 = vmatpush1.msra.mxu0 0.0
        %300 = vmatprep.subr.mxu0 0.0
        %301 = vmatpush1.msra.mxu0 0.0
        %302 = vmatprep.subr.mxu0 0.0
        %303 = vmatpush1.msra.mxu0 0.0
        %304 = vmatprep.subr.mxu0 0.0
        %305 = vmatpush1.msra.mxu0 0.0
        %306 = vmatprep.subr.mxu0 0.0
        %307 = vmatpush1.msra.mxu0 0.0
        %308 = vmatprep.subr.mxu0 0.0
        %309 = vmatpush1.msra.mxu0 0.0
        %310 = vmatprep.subr.mxu0 0.0
        %311 = vmatpush1.msra.mxu0 0.0
        %312 = vmatprep.subr.mxu0 0.0
        %313 = vmatpush1.msra.mxu0 0.0
        %314 = vmatprep.subr.mxu0 0.0
        %315 = vmatpush1.msra.mxu0 0.0
        %316 = vmatprep.subr.mxu0 0.0
        %317 = vmatpush1.msra.mxu0 0.0
        %318 = vmatprep.subr.mxu0 0.0
        %319 = vmatpush1.msra.mxu0 0.0
        %320 = vmatprep.subr.mxu0 0.0
        %321 = vmatpush1.msra.mxu0 0.0
        %322 = vmatprep.subr.mxu0 0.0
        %323 = vmatpush1.msra.mxu0 0.0
        %324 = vmatprep.subr.mxu0 0.0
        %325 = vmatpush1.msra.mxu0 0.0
        %326 = vmatprep.subr.mxu0 0.0
        %327 = vmatpush1.msra.mxu0 0.0
        %328 = vmatprep.subr.mxu0 0.0
        %329 = vmatpush1.msra.mxu0 0.0
        %330 = vmatprep.subr.mxu0 0.0
        %331 = vmatpush1.msra.mxu0 0.0
        %332 = vmatprep.subr.mxu0 0.0
        %333 = vmatpush1.msra.mxu0 0.0
        %334 = vmatprep.subr.mxu0 0.0
        %335 = vmatpush1.msra.mxu0 0.0
        %336 = vmatprep.subr.mxu0 0.0
        %337 = vmatpush1.msra.mxu0 0.0
        %338 = vmatprep.subr.mxu0 0.0
        %339 = vmatpush1.msra.mxu0 0.0
        %340 = vmatprep.subr.mxu0 0.0
        %341 = vmatpush1.msra.mxu0 0.0
        %342 = vmatprep.subr.mxu0 0.0
        %343 = vmatpush1.msra.mxu0 0.0
        %344 = vmatprep.subr.mxu0 0.0
        %345 = vmatpush1.msra.mxu0 0.0
        %346 = vmatprep.subr.mxu0 0.0
        %347 = vmatpush1.msra.mxu0 0.0
        %348 = vmatprep.subr.mxu0 0.0
        %349 = vmatpush1.msra.mxu0 0.0
        %350 = vmatprep.subr.mxu0 0.0
        %351 = vmatpush1.msra.mxu0 0.0
        %352 = vmatprep.mubr.f32.mxu0 0.0
        %353 = vmatmul.mubr.f32.gmra.mrb[0].mxu0 %v286
        %v354 = vpop.f32.mrb[0].mxu0
        %v355 = vadd.f32 %v282, %v354
        %v356 = vpop.f32.mrb[0].mxu0
        %357 = vdwg.mxu0
        %v359 = vlaneseq
        %v360 = vshrl.u32 %v359, 7
        %v361 = vsub.s32 0, %v360
        %v362 = vrot.slane %v277, %v361
        %364 = vrot.lane.b32.xlu0 %v269, 96
        %v365 = vpop.permute.xlu0 %364
        %vm366 = vcmask 130048
        %v367 = vsel %vm366, %v365, 0
        %369 = vmatprep.subr.mxu0 0.0
        %370 = vmatpush1.msra.mxu0 %v274
        %371 = vmatprep.subr.mxu0 0.0
        %372 = vmatpush1.msra.mxu0 %v275
        %373 = vmatprep.subr.mxu0 0.0
        %374 = vmatpush1.msra.mxu0 0.0
        %375 = vmatprep.subr.mxu0 0.0
        %376 = vmatpush1.msra.mxu0 0.0
        %377 = vmatprep.subr.mxu0 0.0
        %378 = vmatpush1.msra.mxu0 0.0
        %379 = vmatprep.subr.mxu0 0.0
        %380 = vmatpush1.msra.mxu0 0.0
        %381 = vmatprep.subr.mxu0 0.0
        %382 = vmatpush1.msra.mxu0 0.0
        %383 = vmatprep.subr.mxu0 0.0
        %384 = vmatpush1.msra.mxu0 0.0
        %385 = vmatprep.subr.mxu0 0.0
        %386 = vmatpush1.msra.mxu0 0.0
        %387 = vmatprep.subr.mxu0 0.0
        %388 = vmatpush1.msra.mxu0 0.0
        %389 = vmatprep.subr.mxu0 0.0
        %390 = vmatpush1.msra.mxu0 0.0
        %391 = vmatprep.subr.mxu0 0.0
        %392 = vmatpush1.msra.mxu0 0.0
        %393 = vmatprep.subr.mxu0 0.0
        %394 = vmatpush1.msra.mxu0 0.0
        %395 = vmatprep.subr.mxu0 0.0
        %396 = vmatpush1.msra.mxu0 0.0
        %397 = vmatprep.subr.mxu0 0.0
        %398 = vmatpush1.msra.mxu0 0.0
        %399 = vmatprep.subr.mxu0 0.0
        %400 = vmatpush1.msra.mxu0 0.0
        %401 = vmatprep.subr.mxu0 0.0
        %402 = vmatpush1.msra.mxu0 0.0
        %403 = vmatprep.subr.mxu0 0.0
        %404 = vmatpush1.msra.mxu0 0.0
        %405 = vmatprep.subr.mxu0 0.0
        %406 = vmatpush1.msra.mxu0 0.0
        %407 = vmatprep.subr.mxu0 0.0
        %408 = vmatpush1.msra.mxu0 0.0
        %409 = vmatprep.subr.mxu0 0.0
        %410 = vmatpush1.msra.mxu0 0.0
        %411 = vmatprep.subr.mxu0 0.0
        %412 = vmatpush1.msra.mxu0 0.0
        %413 = vmatprep.subr.mxu0 0.0
        %414 = vmatpush1.msra.mxu0 0.0
        %415 = vmatprep.subr.mxu0 0.0
        %416 = vmatpush1.msra.mxu0 0.0
        %417 = vmatprep.subr.mxu0 0.0
        %418 = vmatpush1.msra.mxu0 0.0
        %419 = vmatprep.subr.mxu0 0.0
        %420 = vmatpush1.msra.mxu0 0.0
        %421 = vmatprep.subr.mxu0 0.0
        %422 = vmatpush1.msra.mxu0 0.0
        %423 = vmatprep.subr.mxu0 0.0
        %424 = vmatpush1.msra.mxu0 0.0
        %425 = vmatprep.subr.mxu0 0.0
        %426 = vmatpush1.msra.mxu0 0.0
        %427 = vmatprep.subr.mxu0 0.0
        %428 = vmatpush1.msra.mxu0 0.0
        %429 = vmatprep.subr.mxu0 0.0
        %430 = vmatpush1.msra.mxu0 0.0
        %431 = vmatprep.subr.mxu0 0.0
        %432 = vmatpush1.msra.mxu0 0.0
        %433 = vmatprep.mubr.f32.mxu0 0.0
        %434 = vmatmul.mubr.f32.gmra.mrb[0].mxu0 %v367
        %v435 = vpop.f32.mrb[0].mxu0
        %v436 = vadd.f32 %v362, %v435
        %v437 = vpop.f32.mrb[0].mxu0
        %438 = vdwg.mxu0
        %v439 = vmax.f32 %v436, 0.0
        %v440 = vand.u32 2147483647, %v355
        %vm441 = vcmp.le.f32.partialorder %v440, 0.7853982
        %vm442 = vcmp.lt.s32.totalorder %v355, 0
        %v443 = vand.u32 %v355, 2139095040
        %v444 = vshrl.u32 %v443, 23
        %v445 = vsub.s32 %v444, 127
        %v446 = vand.u32 2147483647, %v355
        %v447 = vand.u32 %v446, 8388607
        %v448 = vor.u32 %v447, 8388608
        %v449 = vsub.s32 0, %v448
        %v450 = vadd.s32 %v445, 1
        %vm451 = vcmp.gt.s32.totalorder %v450, 0
        %v452 = vsel %vm451, %v450, 0
        %v453 = vshrl.u32 %v452, 5
        %v454 = vand.u32 %v452, 31
        %v455 = vsub.s32 32, %v454
        %v456 = vshrl.u32 683565275, %v455
        %v457 = vshll.u32 683565275, %v454
        %v458 = vshrl.u32 2475754826, %v455
        %v459 = vor.u32 %v457, %v458
        %v460 = vshll.u32 2475754826, %v454
        %v461 = vshrl.u32 2131351028, %v455
        %v462 = vor.u32 %v460, %v461
        %v463 = vshll.u32 2131351028, %v454
        %v464 = vshrl.u32 2102212464, %v455
        %v465 = vor.u32 %v463, %v464
        %v466 = vshll.u32 2102212464, %v454
        %v467 = vshrl.u32 920167782, %v455
        %v468 = vor.u32 %v466, %v467
        %v469 = vshll.u32 920167782, %v454
        %v470 = vshrl.u32 1326507024, %v455
        %v471 = vor.u32 %v469, %v470
        %vm472 = vcmp.lt.s32.totalorder %v453, 1
        %vm473 = vcmp.lt.s32.totalorder %v453, 2
        %vm474 = vcmp.lt.s32.totalorder %v453, 3
        %vm475 = vcmp.lt.s32.totalorder %v453, 4
        %v476 = vsel %vm472, %v456, %v459
        %v477 = vsel %vm475, %v465, 2102212464
        %v478 = vsel %vm474, %v462, %v477
        %v479 = vsel %vm473, %v476, %v478
        %v480 = vsel %vm472, %v459, %v462
        %v481 = vsel %vm475, %v468, 920167782
        %v482 = vsel %vm474, %v465, %v481
        %v483 = vsel %vm473, %v480, %v482
        %v484 = vsel %vm472, %v462, %v465
        %v485 = vsel %vm475, %v471, 1326507024
        %v486 = vsel %vm474, %v468, %v485
        %v487 = vsel %vm473, %v484, %v486
        %v488 = vshll.u32 %v448, 8
        %v489 = vmul.u32.u64.compose %v488, %v487
        %v490 = vextract.low.u32 %v489
        %v491 = vextract.high.u32 %v489
        %v492 = vmul.u32.u64.compose %v488, %v483
        %v493 = vextract.low.u32 %v492
        %v494 = vextract.high.u32 %v492
        %v495 = vmul.u32 %v488, %v479
        %v496 = vadd.s32 %v491, %v493
        %vm497 = vc.u32 %v491, %v493
        %v498 = vadd.s32 %v494, 1
        %v499 = vsel %vm497, %v498, %v494
        %v500 = vadd.s32 %v495, %v499
        %v501 = vadd.s32 %v500, 536870912
        %v502 = vshrl.u32 %v501, 30
        %v503 = vshll.u32 %v502, 30
        %v504 = vsub.s32 %v500, %v503
        %vm505 = vcmp.lt.s32.totalorder %v504, 0
        %v506 = vsub.s32 0, %v504
        %v507 = vsel %vm505, %v506, %v504
        %v508 = vclz %v507
        %v509 = vsub.s32 %v508, 2
        %vm510 = vcmp.gt.s32.totalorder 0, %v509
        %v511 = vsel %vm510, 0, %v509
        %v512 = vsub.s32 32, %v511
        %v513 = vshll.u32 %v504, %v511
        %v514 = vshrl.u32 %v496, %v512
        %v515 = vor.u32 %v513, %v514
        %v516 = vsub.s32 4294967266, %v511
        %v517 = vadd.s32 %v516, 127
        %v518 = vshll.u32 %v517, 23
        %v519 = vor.u32 4788187, %v518
        %v520 = vand.u32 2147483647, %v519
        %v522 = vcvt.s32.f32 %v515
        %v523 = vmul.f32 %v522, %v520
        %v524 = vxor.u32 %v523, 2147483648
        %v525 = vsel %vm442, %v524, %v523
        %v526 = vsub.s32 4, %v502
        %v527 = vsel %vm442, %v526, %v502
        %v528 = vsel %vm441, %v355, %v525
        %v529 = vsel %vm441, 0, %v527
        %v530 = vcosq.f32.pop %v528
        %v531 = vsinq.f32.pop %v528
        %vm532 = vweird.f32 %v355
        %v533 = vadd.s32 %v529, 3
        %v534 = vand.u32 %v533, 3
        %vm535 = vcmp.lt.s32.totalorder %v534, 2
        %vm536 = vcmp.eq.s32.totalorder %v534, 0
        %v537 = vxor.u32 %v531, 2147483648
        %v538 = vsel %vm536, %v530, %v537
        %vm539 = vcmp.eq.s32.totalorder %v534, 2
        %v540 = vxor.u32 %v530, 2147483648
        %v541 = vsel %vm539, %v540, %v531
        %v542 = vsel %vm535, %v538, %v541
        %v543 = vsel %vm532, nan, %v542
        %v544 = vmul.f32 %v439, %v543
        %545 = vst.msk [vmem:[%s268] sm:$0xff] %vm284, %v544
        %547 = vrot.lane.b32.xlu0 %v439, 32
        %v548 = vpop.permute.xlu0 %547
        %vm550 = vcmask 523520
        %551 = vst.msk [vmem:[%s268] sm:$0xff] %vm550, %v548
        %552 = vrot.lane.b32.xlu0 %v269, 32
        %v553 = vpop.permute.xlu0 %552
        %vm555 = vcmask 654848
        %556 = vst.msk [vmem:[%s268] sm:$0xff] %vm555, %v553
        %s557 = sand.u32 %s141, 1
        %s558 = scalar_lea.sflag [#allocation4], %s557
        %s559 = sand.u32 %s141, 1
        %s560 = smul.addr %s559, 8
        %s561 = scalar_lea.vmem [#allocation8], %s560
        // Predicated region
        $region53: #{tpu_custom_call.1} parent=39 // pred_check
          %p562 = pneg %p151
        $region54: #{tpu_custom_call.1} parent=39 // pred_check_branch
          %564 = sbr.rel (%p562) target = $region56
        $region55: #{tpu_custom_call.1} parent=39 // pred_region
          %s566 = ssub.s32 128, 128
          %567 = vsyncadd %s558, %s566
          %s568 = smul.addr %s23, 128
          %s569 = scalar_lea.hbm %s5, %s568
          %s571 = sshll.u32 %s561, 4
          %s572 = int_to_ptr.vmem [resolvable:$true] %s571
          %574 = dma.vmem_to_hbm [thread:$0]  %s572, 128, %s569, %s558
        $region56: #{tpu_custom_call.1} parent=39 // pred_fallthru
          _
      $region40: #{tpu_custom_call.1} parent=5 // pred_fallthru
        _
      %p575 = scmp.le.s32.totalorder 2, %s18
      // Predicated region
      $region57: #{tpu_custom_call.1} parent=5 // pred_check
        %p576 = pneg %p575
      $region58: #{tpu_custom_call.1} parent=5 // pred_check_branch
        %578 = sbr.rel (%p576) target = $region60
      $region59: #{tpu_custom_call.1} parent=5 // pred_region
        %s579 = ssub.s32 %s18, 2
        // Predicated region
        $region61: #{tpu_custom_call.1} parent=59 // pred_check
          %p580 = pneg %p157
        $region62: #{tpu_custom_call.1} parent=59 // pred_check_branch
          %582 = sbr.rel (%p580) target = $region64
        $region63: #{tpu_custom_call.1} parent=59 // pred_region
          %s583 = sand.u32 %s142, 1
          %s584 = scalar_lea.sflag [#allocation4], %s583
          %s585 = sand.u32 %s142, 1
          %s586 = smul.addr %s585, 8
          %s587 = scalar_lea.vmem [#allocation8], %s586
          %588 = dma.done %s584, 128
        $region64: #{tpu_custom_call.1} parent=59 // pred_fallthru
          _
      $region60: #{tpu_custom_call.1} parent=5 // pred_fallthru
        _
    $region6: #{tpu_custom_call.1} parent=1 // loop_footer
      %s22 = sadd.s32 1, %s18
    $region7: #{tpu_custom_call.1} parent=1 // loop_footer_branch
      %17 = sbr.rel target = $region3
    $region8: #{tpu_custom_call.1} parent=1 // loop_exit
      _
    %589 = vsyncpa [#allocation3], 1
    %s590 = scalar_lea.sflag [#allocation3], 1
    %591 = vsyncpa %s590, 1
    %592 = vsyncpa [#allocation6], 1
    %593 = vsyncpa [#allocation4], 1
    %s594 = scalar_lea.sflag [#allocation4], 1
    %595 = vsyncpa %s594, 1

</llo_original>
